<compile_context>
chip_gen: v7x
topology: tpu7x:2x2x1
jax: 0.10.0
libtpu: 0.0.40
codegen_flags: <defaults>
</compile_context>

<pallas_src>
import jax
import jax.numpy as jnp
from jax.experimental import pallas as pl
from jax.experimental.pallas import tpu as pltpu  # noqa: F401  (TPU backend)


def attention_cell_kernel(
    h_ref, c_ref, bH_ref, onehot_ref,
    w_i2h_ref, w_h2h_ref, b_h2h_ref, w_score_ref,
    wx4_ref, we4_ref, wh4_ref, bg_ref,
    h_out_ref, c_out_ref, alpha_out_ref,
):
    B, T, I = bH_ref.shape
    H = h_ref.shape[1]

    h_prev = h_ref[...]                                  # [B, H]
    c_prev = c_ref[...]                                  # [B, H]
    bH = bH_ref[...]                                     # [B, T, I]
    onehot = onehot_ref[...]                             # [B, E]

    # ---- context-independent LSTM gate pre-activations (hoisted ahead of the
    # softmax -> context dependency chain; N = 4H = 128 lanes per dot) ----------
    gate_base = (
        jnp.dot(onehot, we4_ref[...], preferred_element_type=jnp.float32)
        + jnp.dot(h_prev, wh4_ref[...], preferred_element_type=jnp.float32)
        + bg_ref[...]
    )                                                    # [B, 4H]

    # ---- attention scores ------------------------------------------------------
    # i2h(batch_H): batched MXU matmul (weight broadcast over B) — no reshapes.
    w_i2h_b = jnp.broadcast_to(w_i2h_ref[...], (B,) + w_i2h_ref.shape)  # [B, I, H]
    proj = jnp.einsum('bti,bih->bth', bH, w_i2h_b,
                      preferred_element_type=jnp.float32)               # [B, T, H]
    h_proj = jnp.dot(h_prev, w_h2h_ref[...],
                     preferred_element_type=jnp.float32) + b_h2h_ref[...]  # [B, H]
    t_act = jnp.tanh(proj + h_proj[:, None, :])                         # [B, T, H]

    # score(.): contract H on the lane axis, keep T on the sublane axis so the
    # softmax output broadcasts directly into the context reduction.
    e = jnp.sum(t_act * w_score_ref[...][None], axis=-1, keepdims=True)  # [B, T, 1]

    # softmax over T (exact division to hold the 1e-5 validation tolerance)
    m = jnp.max(e, axis=1, keepdims=True)                               # [B, 1, 1]
    p = jnp.exp(e - m)                                                  # [B, T, 1]
    alpha = p / jnp.sum(p, axis=1, keepdims=True)                       # [B, T, 1]

    # context = sum_t alpha[b,t] * batch_H[b,t,:] — VPU multiply + T reduce.
    context = jnp.sum(alpha * bH, axis=1)                               # [B, I]

    # ---- LSTMCell on [context, char_onehots] ------------------------------------
    gates = gate_base + jnp.dot(context, wx4_ref[...],
                                preferred_element_type=jnp.float32)     # [B, 4H]
    i_g = jax.nn.sigmoid(gates[:, 0 * H:1 * H])
    f_g = jax.nn.sigmoid(gates[:, 1 * H:2 * H])
    g_g = jnp.tanh(gates[:, 2 * H:3 * H])
    o_g = jax.nn.sigmoid(gates[:, 3 * H:4 * H])

    c_new = f_g * c_prev + i_g * g_g
    h_new = o_g * jnp.tanh(c_new)

    h_out_ref[...] = h_new
    c_out_ref[...] = c_new
    alpha_out_ref[...] = alpha


def prepare_attention_cell_params(params):
    """One-time re-layout of PyTorch-style parameters for the kernel.

    PyTorch Linear/LSTMCell store W as [out, in]; the kernel wants x @ W layouts,
    LSTM gate weights packed along a lane-dense 4H output axis (4H = 128), split into
    the context / onehot / hidden input blocks, and fused biases.  Call once and
    reuse the result for every decode step (removes per-step transposes & HBM copies).
    """
    H = params["w_h2h"].shape[0]
    I = params["w_i2h"].shape[1]
    w_ih_T = params["w_ih"].T                              # [I+E, 4H]
    return {
        "w_i2h_T": params["w_i2h"].T,                      # [I, H]
        "w_h2h_T": params["w_h2h"].T,                      # [H, H]
        "b_h2h":   params["b_h2h"][None, :],               # [1, H]
        "w_score": params["w_score"].reshape(1, H),        # [1, H]
        "wx4":     w_ih_T[:I, :],                          # [I, 4H]  context block
        "we4":     w_ih_T[I:, :],                          # [E, 4H]  one-hot block
        "wh4":     params["w_hh"].T,                       # [H, 4H]
        "b_gate":  (params["b_ih"] + params["b_hh"])[None, :],  # [1, 4H]
    }


def attention_cell(prev_hidden, batch_H, char_onehots, prepared):
    """Pallas implementation of AttentionCell.forward.

    Returns ((h_new, c_new), alpha) with alpha of shape [B, T, 1], matching PyTorch.
    """
    h, c = prev_hidden
    B, T, _ = batch_H.shape
    H = h.shape[1]

    out_shape = (
        jax.ShapeDtypeStruct((B, H), jnp.float32),   # h_new
        jax.ShapeDtypeStruct((B, H), jnp.float32),   # c_new
        jax.ShapeDtypeStruct((B, T, 1), jnp.float32),  # alpha
    )

    # Single program (grid=()): all operands (~60 KB) live in VMEM for the call.
    # For large B, tile the batch with a ("parallel",) grid axis (sharded across
    # TensorCores on v7x) and keep the fused-gate output lane-dense.
    h_new, c_new, alpha = pl.pallas_call(
        attention_cell_kernel,
        out_shape=out_shape,
    )(h, c, batch_H, char_onehots,
      prepared["w_i2h_T"], prepared["w_h2h_T"], prepared["b_h2h"], prepared["w_score"],
      prepared["wx4"], prepared["we4"], prepared["wh4"], prepared["b_gate"])

    return (h_new, c_new), alpha


# ----------------------------- pure-JAX reference -----------------------------
def attention_cell_ref(prev_hidden, batch_H, char_onehots, params):
    h, c = prev_hidden
    H = h.shape[1]
    proj = jnp.einsum("bti,hi->bth", batch_H, params["w_i2h"])
    hp = h @ params["w_h2h"].T + params["b_h2h"]
    e = jnp.einsum("bth,oh->bto", jnp.tanh(proj + hp[:, None, :]), params["w_score"])
    alpha = jax.nn.softmax(e, axis=1)                              # [B, T, 1]
    context = jnp.sum(alpha * batch_H, axis=1)                     # [B, I]
    concat = jnp.concatenate([context, char_onehots], axis=1)
    gates = (concat @ params["w_ih"].T + params["b_ih"]
             + h @ params["w_hh"].T + params["b_hh"])
    i_g = jax.nn.sigmoid(gates[:, 0 * H:1 * H])
    f_g = jax.nn.sigmoid(gates[:, 1 * H:2 * H])
    g_g = jnp.tanh(gates[:, 2 * H:3 * H])
    o_g = jax.nn.sigmoid(gates[:, 3 * H:4 * H])
    c_new = f_g * c + i_g * g_g
    h_new = o_g * jnp.tanh(c_new)
    return (h_new, c_new), alpha


if __name__ == "__main__":
    B, T = 2, 8                 # batch, sequence length (num encoder steps)
    I = 32                      # input_size  (encoder feature dim)
    H = 32                      # hidden_size
    E = 10                      # num_embeddings (num classes for one-hots)

    key = jax.random.PRNGKey(0)
    keys = jax.random.split(key, 12)

    params = {
        "w_i2h":  0.1 * jax.random.normal(keys[0], (H, I), jnp.float32),
        "w_h2h":  0.1 * jax.random.normal(keys[1], (H, H), jnp.float32),
        "b_h2h":  0.1 * jax.random.normal(keys[2], (H,), jnp.float32),
        "w_score": 0.1 * jax.random.normal(keys[3], (1, H), jnp.float32),
        "w_ih":   0.1 * jax.random.normal(keys[4], (4 * H, I + E), jnp.float32),
        "b_ih":   0.1 * jax.random.normal(keys[5], (4 * H,), jnp.float32),
        "w_hh":   0.1 * jax.random.normal(keys[6], (4 * H, H), jnp.float32),
        "b_hh":   0.1 * jax.random.normal(keys[7], (4 * H,), jnp.float32),
    }

    h0 = jax.random.normal(keys[8], (B, H), jnp.float32)
    c0 = jax.random.normal(keys[9], (B, H), jnp.float32)
    batch_H = jax.random.normal(keys[10], (B, T, I), jnp.float32)
    char_ids = jax.random.randint(keys[11], (B,), 0, E)
    char_onehots = jax.nn.one_hot(char_ids, E, dtype=jnp.float32)

    # One-time parameter preparation (hoisted out of the per-step path).
    prepared = prepare_attention_cell_params(params)
    prepared = jax.tree_util.tree_map(jnp.asarray, prepared)

    step = jax.jit(attention_cell)
    (h_new, c_new), alpha = step((h0, c0), batch_H, char_onehots, prepared)
    jax.block_until_ready((h_new, c_new, alpha))

    (h_ref, c_ref), alpha_ref = attention_cell_ref((h0, c0), batch_H,
                                                   char_onehots, params)

    assert jnp.allclose(h_new, h_ref, atol=1e-5, rtol=1e-5)
    assert jnp.allclose(c_new, c_ref, atol=1e-5, rtol=1e-5)
    assert jnp.allclose(alpha, alpha_ref, atol=1e-5, rtol=1e-5)
    print("KERNEL_OK")
</pallas_src>

<mosaic_0001>
module attributes {stable_mosaic.version = 11 : i64} {
  func.func @attention_cell_kernel(%arg0: memref<2x32xf32, #tpu.memory_space<vmem>>, %arg1: memref<2x32xf32, #tpu.memory_space<vmem>>, %arg2: memref<2x8x32xf32, #tpu.memory_space<vmem>>, %arg3: memref<2x10xf32, #tpu.memory_space<vmem>>, %arg4: memref<32x32xf32, #tpu.memory_space<vmem>>, %arg5: memref<32x32xf32, #tpu.memory_space<vmem>>, %arg6: memref<1x32xf32, #tpu.memory_space<vmem>>, %arg7: memref<1x32xf32, #tpu.memory_space<vmem>>, %arg8: memref<32x128xf32, #tpu.memory_space<vmem>>, %arg9: memref<10x128xf32, #tpu.memory_space<vmem>>, %arg10: memref<32x128xf32, #tpu.memory_space<vmem>>, %arg11: memref<1x128xf32, #tpu.memory_space<vmem>>, %arg12: memref<2x32xf32, #tpu.memory_space<vmem>>, %arg13: memref<2x32xf32, #tpu.memory_space<vmem>>, %arg14: memref<2x8x1xf32, #tpu.memory_space<vmem>>) attributes {dimension_semantics = [], scalar_prefetch = 0 : i64, scratch_operands = 0 : i64, tpu.core_type = #tpu.core_type<tc>} {
    %c0 = arith.constant 0 : index
    %c0_0 = arith.constant 0 : index
    %0 = vector.load %arg0[%c0, %c0_0] : memref<2x32xf32, #tpu.memory_space<vmem>>, vector<2x32xf32>
    %c0_1 = arith.constant 0 : index
    %c0_2 = arith.constant 0 : index
    %1 = vector.load %arg1[%c0_1, %c0_2] : memref<2x32xf32, #tpu.memory_space<vmem>>, vector<2x32xf32>
    %c0_3 = arith.constant 0 : index
    %c0_4 = arith.constant 0 : index
    %c0_5 = arith.constant 0 : index
    %2 = vector.load %arg2[%c0_3, %c0_4, %c0_5] : memref<2x8x32xf32, #tpu.memory_space<vmem>>, vector<2x8x32xf32>
    %c0_6 = arith.constant 0 : index
    %c0_7 = arith.constant 0 : index
    %3 = vector.load %arg3[%c0_6, %c0_7] : memref<2x10xf32, #tpu.memory_space<vmem>>, vector<2x10xf32>
    %c0_8 = arith.constant 0 : index
    %c0_9 = arith.constant 0 : index
    %4 = vector.load %arg9[%c0_8, %c0_9] : memref<10x128xf32, #tpu.memory_space<vmem>>, vector<10x128xf32>
    %cst = arith.constant dense<0.000000e+00> : vector<2x128xf32>
    %5 = tpu.matmul %3, %4, %cst {dimension_numbers = #tpu.dot_dimension_numbers<[1], [0], [0], [1], [0, 0, 1, 1], [], []>} : vector<2x10xf32>, vector<10x128xf32>, vector<2x128xf32> -> vector<2x128xf32>
    %c0_10 = arith.constant 0 : index
    %c0_11 = arith.constant 0 : index
    %6 = vector.load %arg10[%c0_10, %c0_11] : memref<32x128xf32, #tpu.memory_space<vmem>>, vector<32x128xf32>
    %cst_12 = arith.constant dense<0.000000e+00> : vector<2x128xf32>
    %7 = tpu.matmul %0, %6, %cst_12 {dimension_numbers = #tpu.dot_dimension_numbers<[1], [0], [0], [1], [0, 0, 1, 1], [], []>} : vector<2x32xf32>, vector<32x128xf32>, vector<2x128xf32> -> vector<2x128xf32>
    %8 = arith.addf %5, %7 : vector<2x128xf32>
    %c0_13 = arith.constant 0 : index
    %c0_14 = arith.constant 0 : index
    %9 = vector.load %arg11[%c0_13, %c0_14] : memref<1x128xf32, #tpu.memory_space<vmem>>, vector<1x128xf32>
    %10 = vector.broadcast %9 : vector<1x128xf32> to vector<2x128xf32>
    %11 = arith.addf %8, %10 : vector<2x128xf32>
    %c0_15 = arith.constant 0 : index
    %c0_16 = arith.constant 0 : index
    %12 = vector.load %arg4[%c0_15, %c0_16] : memref<32x32xf32, #tpu.memory_space<vmem>>, vector<32x32xf32>
    %13 = vector.shape_cast %12 : vector<32x32xf32> to vector<1x32x32xf32>
    %14 = vector.broadcast %13 : vector<1x32x32xf32> to vector<2x32x32xf32>
    "tpu.trace_start"() <{level = 10 : i32, message = "bti,bih->bth"}> : () -> ()
    %cst_17 = arith.constant dense<0.000000e+00> : vector<2x8x32xf32>
    %15 = tpu.matmul %2, %14, %cst_17 {dimension_numbers = #tpu.dot_dimension_numbers<[2], [1], [1], [2], [0, 0, 0, 1, 1, 2], [0], [0]>} : vector<2x8x32xf32>, vector<2x32x32xf32>, vector<2x8x32xf32> -> vector<2x8x32xf32>
    "tpu.trace_stop"() : () -> ()
    %c0_18 = arith.constant 0 : index
    %c0_19 = arith.constant 0 : index
    %16 = vector.load %arg5[%c0_18, %c0_19] : memref<32x32xf32, #tpu.memory_space<vmem>>, vector<32x32xf32>
    %cst_20 = arith.constant dense<0.000000e+00> : vector<2x32xf32>
    %17 = tpu.matmul %0, %16, %cst_20 {dimension_numbers = #tpu.dot_dimension_numbers<[1], [0], [0], [1], [0, 0, 1, 1], [], []>} : vector<2x32xf32>, vector<32x32xf32>, vector<2x32xf32> -> vector<2x32xf32>
    %c0_21 = arith.constant 0 : index
    %c0_22 = arith.constant 0 : index
    %18 = vector.load %arg6[%c0_21, %c0_22] : memref<1x32xf32, #tpu.memory_space<vmem>>, vector<1x32xf32>
    %19 = vector.broadcast %18 : vector<1x32xf32> to vector<2x32xf32>
    %20 = arith.addf %17, %19 : vector<2x32xf32>
    %21 = vector.shape_cast %20 : vector<2x32xf32> to vector<2x1x32xf32>
    %22 = vector.broadcast %21 : vector<2x1x32xf32> to vector<2x8x32xf32>
    %23 = arith.addf %15, %22 : vector<2x8x32xf32>
    %24 = math.tanh %23 : vector<2x8x32xf32>
    %c0_23 = arith.constant 0 : index
    %c0_24 = arith.constant 0 : index
    %25 = vector.load %arg7[%c0_23, %c0_24] : memref<1x32xf32, #tpu.memory_space<vmem>>, vector<1x32xf32>
    %26 = vector.shape_cast %25 : vector<1x32xf32> to vector<1x1x32xf32>
    %27 = vector.broadcast %26 : vector<1x1x32xf32> to vector<2x8x32xf32>
    %28 = arith.mulf %24, %27 : vector<2x8x32xf32>
    %cst_25 = arith.constant dense<0.000000e+00> : vector<2x8xf32>
    %29 = vector.multi_reduction <add>, %28, %cst_25 [2] : vector<2x8x32xf32> to vector<2x8xf32>
    %30 = vector.shape_cast %29 : vector<2x8xf32> to vector<2x8x1xf32>
    %cst_26 = arith.constant dense<0xFF800000> : vector<2x1xf32>
    %31 = vector.multi_reduction <maximumf>, %30, %cst_26 [1] : vector<2x8x1xf32> to vector<2x1xf32>
    %32 = vector.shape_cast %31 : vector<2x1xf32> to vector<2x1x1xf32>
    %33 = vector.broadcast %32 : vector<2x1x1xf32> to vector<2x8x1xf32>
    %34 = arith.subf %30, %33 : vector<2x8x1xf32>
    %35 = math.exp %34 : vector<2x8x1xf32>
    %cst_27 = arith.constant dense<0.000000e+00> : vector<2x1xf32>
    %36 = vector.multi_reduction <add>, %35, %cst_27 [1] : vector<2x8x1xf32> to vector<2x1xf32>
    %37 = vector.shape_cast %36 : vector<2x1xf32> to vector<2x1x1xf32>
    %38 = vector.broadcast %37 : vector<2x1x1xf32> to vector<2x8x1xf32>
    %39 = arith.divf %35, %38 : vector<2x8x1xf32>
    %40 = vector.broadcast %39 : vector<2x8x1xf32> to vector<2x8x32xf32>
    %41 = arith.mulf %40, %2 : vector<2x8x32xf32>
    %cst_28 = arith.constant dense<0.000000e+00> : vector<2x32xf32>
    %42 = vector.multi_reduction <add>, %41, %cst_28 [1] : vector<2x8x32xf32> to vector<2x32xf32>
    %c0_29 = arith.constant 0 : index
    %c0_30 = arith.constant 0 : index
    %43 = vector.load %arg8[%c0_29, %c0_30] : memref<32x128xf32, #tpu.memory_space<vmem>>, vector<32x128xf32>
    %cst_31 = arith.constant dense<0.000000e+00> : vector<2x128xf32>
    %44 = tpu.matmul %42, %43, %cst_31 {dimension_numbers = #tpu.dot_dimension_numbers<[1], [0], [0], [1], [0, 0, 1, 1], [], []>} : vector<2x32xf32>, vector<32x128xf32>, vector<2x128xf32> -> vector<2x128xf32>
    %45 = arith.addf %11, %44 : vector<2x128xf32>
    %46 = vector.extract_strided_slice %45 {offsets = [0, 0], sizes = [2, 32], strides = [1, 1]} : vector<2x128xf32> to vector<2x32xf32>
    %47 = arith.negf %46 : vector<2x32xf32>
    %48 = math.exp %47 : vector<2x32xf32>
    %cst_32 = arith.constant 1.000000e+00 : f32
    %49 = vector.broadcast %cst_32 : f32 to vector<2x32xf32>
    %50 = arith.addf %49, %48 : vector<2x32xf32>
    %51 = arith.divf %49, %50 : vector<2x32xf32>
    %52 = vector.extract_strided_slice %45 {offsets = [0, 32], sizes = [2, 32], strides = [1, 1]} : vector<2x128xf32> to vector<2x32xf32>
    %53 = arith.negf %52 : vector<2x32xf32>
    %54 = math.exp %53 : vector<2x32xf32>
    %cst_33 = arith.constant 1.000000e+00 : f32
    %55 = vector.broadcast %cst_33 : f32 to vector<2x32xf32>
    %56 = arith.addf %55, %54 : vector<2x32xf32>
    %57 = arith.divf %55, %56 : vector<2x32xf32>
    %58 = vector.extract_strided_slice %45 {offsets = [0, 64], sizes = [2, 32], strides = [1, 1]} : vector<2x128xf32> to vector<2x32xf32>
    %59 = math.tanh %58 : vector<2x32xf32>
    %60 = vector.extract_strided_slice %45 {offsets = [0, 96], sizes = [2, 32], strides = [1, 1]} : vector<2x128xf32> to vector<2x32xf32>
    %61 = arith.negf %60 : vector<2x32xf32>
    %62 = math.exp %61 : vector<2x32xf32>
    %cst_34 = arith.constant 1.000000e+00 : f32
    %63 = vector.broadcast %cst_34 : f32 to vector<2x32xf32>
    %64 = arith.addf %63, %62 : vector<2x32xf32>
    %65 = arith.divf %63, %64 : vector<2x32xf32>
    %66 = arith.mulf %57, %1 : vector<2x32xf32>
    %67 = arith.mulf %51, %59 : vector<2x32xf32>
    %68 = arith.addf %66, %67 : vector<2x32xf32>
    %69 = math.tanh %68 : vector<2x32xf32>
    %70 = arith.mulf %65, %69 : vector<2x32xf32>
    %c0_35 = arith.constant 0 : index
    %c0_36 = arith.constant 0 : index
    %71 = vector.load %arg12[%c0_35, %c0_36] : memref<2x32xf32, #tpu.memory_space<vmem>>, vector<2x32xf32>
    tpu.vector_store %arg12[%c0_35, %c0_36], %70 {strides = array<i32>} : memref<2x32xf32, #tpu.memory_space<vmem>>, vector<2x32xf32>,
    %c0_37 = arith.constant 0 : index
    %c0_38 = arith.constant 0 : index
    %72 = vector.load %arg13[%c0_37, %c0_38] : memref<2x32xf32, #tpu.memory_space<vmem>>, vector<2x32xf32>
    tpu.vector_store %arg13[%c0_37, %c0_38], %68 {strides = array<i32>} : memref<2x32xf32, #tpu.memory_space<vmem>>, vector<2x32xf32>,
    %c0_39 = arith.constant 0 : index
    %c0_40 = arith.constant 0 : index
    %c0_41 = arith.constant 0 : index
    %73 = vector.load %arg14[%c0_39, %c0_40, %c0_41] : memref<2x8x1xf32, #tpu.memory_space<vmem>>, vector<2x8x1xf32>
    tpu.vector_store %arg14[%c0_39, %c0_40, %c0_41], %39 {strides = array<i32>} : memref<2x8x1xf32, #tpu.memory_space<vmem>>, vector<2x8x1xf32>,
    return
  }
}

</mosaic_0001>

<llo_original>
// kernel: attention_cell.1
$region0: #{attention_cell.1}
  #allocation0 [shape = 'u32[]', space=smem, size = 0x4, offset = 0x4, fixed_abs, tag = 'smem constant byte address 0x4 - core index']
  #allocation1 [shape = 'u32[144,128]{1,0:T(1,128)}', space=vmem, size = 0x12000, scoped, tag = 'internal scratch']
  %s0 = inlined_call_operand.hbm [shape: f32[2,32], index: 0, kind: input, shape index: {}]
  %s1 = inlined_call_operand.vmem [shape: f32[2,32], index: 1, kind: input, shape index: {}]
  %s2 = inlined_call_operand.hbm [shape: f32[2,8,32], index: 2, kind: input, shape index: {}]
  %s3 = inlined_call_operand.vmem [shape: f32[2,10], index: 3, kind: input, shape index: {}]
  %s4 = inlined_call_operand.hbm [shape: f32[32,32], index: 4, kind: input, shape index: {}]
  %s5 = inlined_call_operand.hbm [shape: f32[32,32], index: 5, kind: input, shape index: {}]
  %s6 = inlined_call_operand.vmem [shape: f32[1,32], index: 6, kind: input, shape index: {}]
  %s7 = inlined_call_operand.vmem [shape: f32[1,32], index: 7, kind: input, shape index: {}]
  %s8 = inlined_call_operand.vmem [shape: f32[32,128], index: 8, kind: input, shape index: {}]
  %s9 = inlined_call_operand.hbm [shape: f32[10,128], index: 9, kind: input, shape index: {}]
  %s10 = inlined_call_operand.hbm [shape: f32[32,128], index: 10, kind: input, shape index: {}]
  %s11 = inlined_call_operand.vmem [shape: f32[1,128], index: 11, kind: input, shape index: {}]
  %s12 = inlined_call_operand.hbm [shape: f32[2,32], index: 12, kind: output, shape index: {0}]
  %s13 = inlined_call_operand.hbm [shape: f32[2,32], index: 13, kind: output, shape index: {1}]
  %s14 = inlined_call_operand.vmem [shape: f32[2,8,1], index: 14, kind: output, shape index: {2}]
  %15 = xla_tuple %s12, %s13, %s14
  %s16 = sld [smem:[#allocation0]]
  $region98: #{attention_cell.1} parent=0
    _
  %s18 = ssub.s32 1, %s16
  %s19 = scalar_select 0, %s18, %s16
  $region1: #{attention_cell.1} parent=0
    #allocation2 [shape = 'u8[1024]{0}', space=vmem, size = 0x400, scoped, tag = 'input window, operand 0, single buffered']
    #allocation3 [shape = 's32[1]{0}', space=sflag, size = 0x4, scoped, tag = 'scoped memory for attention_cell.1']
    #allocation4 [shape = 's32[1]{0}', space=sflag, size = 0x4, scoped, tag = 'scoped memory for attention_cell.1']
    #allocation5 [shape = 'u8[8192]{0}', space=vmem, size = 0x2000, scoped, tag = 'input window, operand 2, single buffered']
    #allocation6 [shape = 's32[1]{0}', space=sflag, size = 0x4, scoped, tag = 'scoped memory for attention_cell.1']
    #allocation7 [shape = 'u8[16384]{0}', space=vmem, size = 0x4000, scoped, tag = 'input window, operand 4, single buffered']
    #allocation8 [shape = 'u8[16384]{0}', space=vmem, size = 0x4000, scoped, tag = 'input window, operand 5, single buffered']
    #allocation9 [shape = 's32[1]{0}', space=sflag, size = 0x4, scoped, tag = 'scoped memory for attention_cell.1']
    #allocation10 [shape = 'u8[8192]{0}', space=vmem, size = 0x2000, scoped, tag = 'input window, operand 9, single buffered']
    #allocation11 [shape = 'u8[16384]{0}', space=vmem, size = 0x4000, scoped, tag = 'input window, operand 10, single buffered']
    #allocation12 [shape = 's32[1]{0}', space=sflag, size = 0x4, scoped, tag = 'scoped memory for attention_cell.1']
    #allocation13 [shape = 'u8[1024]{0}', space=vmem, size = 0x400, scoped, tag = 'output window, operand 0, single buffered']
    #allocation14 [shape = 'u8[1024]{0}', space=vmem, size = 0x400, scoped, tag = 'output window, operand 1, single buffered']
    #allocation15 [shape = 's32[1]{0}', space=sflag, size = 0x4, scoped, tag = 'scoped memory for attention_cell.1']
    %20 = vsyncpa [#allocation3], 0
    %21 = vsyncpa [#allocation6], 0
    %22 = vsyncpa [#allocation9], 0
    %23 = vsyncpa [#allocation12], 0
    %24 = vsyncpa [#allocation4], 0
    %25 = vsyncpa [#allocation15], 0
    // Predicated region
    $region2: #{attention_cell.1} parent=1 // pred_check
      _
    $region3: #{attention_cell.1} parent=1 // pred_check_branch
      %27 = sbr.rel (0) target = $region5
    $region4: #{attention_cell.1} parent=1 // pred_region
      %s29 = ssub.s32 32, 32
      %30 = vsyncadd [#allocation3], %s29
      %s32 = sshll.u32 [#allocation2], 4
      %s33 = int_to_ptr.vmem [resolvable:$true] %s32
      %35 = dma.hbm_to_vmem [thread:$0]  %s0, 32, %s33, [#allocation3]
    $region5: #{attention_cell.1} parent=1 // pred_fallthru
      _
    // Predicated region
    $region6: #{attention_cell.1} parent=1 // pred_check
      _
    $region7: #{attention_cell.1} parent=1 // pred_check_branch
      %37 = sbr.rel (0) target = $region9
    $region8: #{attention_cell.1} parent=1 // pred_region
      _
    $region9: #{attention_cell.1} parent=1 // pred_fallthru
      _
    // Predicated region
    $region10: #{attention_cell.1} parent=1 // pred_check
      _
    $region11: #{attention_cell.1} parent=1 // pred_check_branch
      %39 = sbr.rel (0) target = $region13
    $region12: #{attention_cell.1} parent=1 // pred_region
      %s41 = ssub.s32 256, 256
      %42 = vsyncadd [#allocation6], %s41
      %s43 = sshll.u32 [#allocation5], 4
      %s44 = int_to_ptr.vmem [resolvable:$true] %s43
      %49 = dma.hbm_to_vmem [thread:$0]  %s2, 256, %s44, [#allocation6], 128, 128, 8
    $region13: #{attention_cell.1} parent=1 // pred_fallthru
      _
    // Predicated region
    $region14: #{attention_cell.1} parent=1 // pred_check
      _
    $region15: #{attention_cell.1} parent=1 // pred_check_branch
      %51 = sbr.rel (0) target = $region17
    $region16: #{attention_cell.1} parent=1 // pred_region
      _
    $region17: #{attention_cell.1} parent=1 // pred_fallthru
      _
    // Predicated region
    $region18: #{attention_cell.1} parent=1 // pred_check
      _
    $region19: #{attention_cell.1} parent=1 // pred_check_branch
      %53 = sbr.rel (0) target = $region21
    $region20: #{attention_cell.1} parent=1 // pred_region
      %s55 = ssub.s32 512, 512
      %56 = vsyncadd [#allocation6], %s55
      %s57 = sshll.u32 [#allocation7], 4
      %s58 = int_to_ptr.vmem [resolvable:$true] %s57
      %63 = dma.hbm_to_vmem [thread:$0]  %s4, 512, %s58, [#allocation6], 128, 128, 8
    $region21: #{attention_cell.1} parent=1 // pred_fallthru
      _
    // Predicated region
    $region22: #{attention_cell.1} parent=1 // pred_check
      _
    $region23: #{attention_cell.1} parent=1 // pred_check_branch
      %65 = sbr.rel (0) target = $region25
    $region24: #{attention_cell.1} parent=1 // pred_region
      %s67 = ssub.s32 512, 512
      %68 = vsyncadd [#allocation9], %s67
      %s69 = sshll.u32 [#allocation8], 4
      %s70 = int_to_ptr.vmem [resolvable:$true] %s69
      %75 = dma.hbm_to_vmem [thread:$0]  %s5, 512, %s70, [#allocation9], 128, 128, 8
    $region25: #{attention_cell.1} parent=1 // pred_fallthru
      _
    // Predicated region
    $region26: #{attention_cell.1} parent=1 // pred_check
      _
    $region27: #{attention_cell.1} parent=1 // pred_check_branch
      %77 = sbr.rel (0) target = $region29
    $region28: #{attention_cell.1} parent=1 // pred_region
      _
    $region29: #{attention_cell.1} parent=1 // pred_fallthru
      _
    // Predicated region
    $region30: #{attention_cell.1} parent=1 // pred_check
      _
    $region31: #{attention_cell.1} parent=1 // pred_check_branch
      %79 = sbr.rel (0) target = $region33
    $region32: #{attention_cell.1} parent=1 // pred_region
      _
    $region33: #{attention_cell.1} parent=1 // pred_fallthru
      _
    // Predicated region
    $region34: #{attention_cell.1} parent=1 // pred_check
      _
    $region35: #{attention_cell.1} parent=1 // pred_check_branch
      %81 = sbr.rel (0) target = $region37
    $region36: #{attention_cell.1} parent=1 // pred_region
      _
    $region37: #{attention_cell.1} parent=1 // pred_fallthru
      _
    // Predicated region
    $region38: #{attention_cell.1} parent=1 // pred_check
      _
    $region39: #{attention_cell.1} parent=1 // pred_check_branch
      %83 = sbr.rel (0) target = $region41
    $region40: #{attention_cell.1} parent=1 // pred_region
      %s85 = ssub.s32 256, 256
      %86 = vsyncadd [#allocation9], %s85
      %s87 = sshll.u32 [#allocation10], 4
      %s88 = int_to_ptr.vmem [resolvable:$true] %s87
      %93 = dma.hbm_to_vmem [thread:$0]  %s9, 256, %s88, [#allocation9], 128, 128, 8
    $region41: #{attention_cell.1} parent=1 // pred_fallthru
      _
    // Predicated region
    $region42: #{attention_cell.1} parent=1 // pred_check
      _
    $region43: #{attention_cell.1} parent=1 // pred_check_branch
      %95 = sbr.rel (0) target = $region45
    $region44: #{attention_cell.1} parent=1 // pred_region
      %s97 = ssub.s32 512, 512
      %98 = vsyncadd [#allocation12], %s97
      %s99 = sshll.u32 [#allocation11], 4
      %s100 = int_to_ptr.vmem [resolvable:$true] %s99
      %105 = dma.hbm_to_vmem [thread:$0]  %s10, 512, %s100, [#allocation12], 128, 128, 8
    $region45: #{attention_cell.1} parent=1 // pred_fallthru
      _
    // Predicated region
    $region46: #{attention_cell.1} parent=1 // pred_check
      _
    $region47: #{attention_cell.1} parent=1 // pred_check_branch
      %107 = sbr.rel (0) target = $region49
    $region48: #{attention_cell.1} parent=1 // pred_region
      _
    $region49: #{attention_cell.1} parent=1 // pred_fallthru
      _
    // Predicated region
    $region50: #{attention_cell.1} parent=1 // pred_check
      _
    $region51: #{attention_cell.1} parent=1 // pred_check_branch
      %109 = sbr.rel (0) target = $region53
    $region52: #{attention_cell.1} parent=1 // pred_region
      %110 = dma.done [#allocation3], 32
    $region53: #{attention_cell.1} parent=1 // pred_fallthru
      _
    // Predicated region
    $region54: #{attention_cell.1} parent=1 // pred_check
      _
    $region55: #{attention_cell.1} parent=1 // pred_check_branch
      %112 = sbr.rel (0) target = $region57
    $region56: #{attention_cell.1} parent=1 // pred_region
      %113 = dma.done [#allocation6], 256
    $region57: #{attention_cell.1} parent=1 // pred_fallthru
      _
    // Predicated region
    $region58: #{attention_cell.1} parent=1 // pred_check
      _
    $region59: #{attention_cell.1} parent=1 // pred_check_branch
      %115 = sbr.rel (0) target = $region61
    $region60: #{attention_cell.1} parent=1 // pred_region
      %116 = dma.done [#allocation6], 512
    $region61: #{attention_cell.1} parent=1 // pred_fallthru
      _
    // Predicated region
    $region62: #{attention_cell.1} parent=1 // pred_check
      _
    $region63: #{attention_cell.1} parent=1 // pred_check_branch
      %118 = sbr.rel (0) target = $region65
    $region64: #{attention_cell.1} parent=1 // pred_region
      %119 = dma.done [#allocation9], 512
    $region65: #{attention_cell.1} parent=1 // pred_fallthru
      _
    // Predicated region
    $region66: #{attention_cell.1} parent=1 // pred_check
      _
    $region67: #{attention_cell.1} parent=1 // pred_check_branch
      %121 = sbr.rel (0) target = $region69
    $region68: #{attention_cell.1} parent=1 // pred_region
      %122 = dma.done [#allocation9], 256
    $region69: #{attention_cell.1} parent=1 // pred_fallthru
      _
    // Predicated region
    $region70: #{attention_cell.1} parent=1 // pred_check
      _
    $region71: #{attention_cell.1} parent=1 // pred_check_branch
      %124 = sbr.rel (0) target = $region73
    $region72: #{attention_cell.1} parent=1 // pred_region
      %125 = dma.done [#allocation12], 512
    $region73: #{attention_cell.1} parent=1 // pred_fallthru
      _
    %v126 = vld [vmem:[#allocation2] sm:$0x3]
    %v127 = vld [vmem:[%s1] sm:$0x3]
    %v128 = vld [vmem:[#allocation5] sm:$0xff]
    %v129 = vld [vmem:[#allocation5 + $0x8] sm:$0xff]
    %v130 = vld [vmem:[%s3] sm:$0x3]
    %v131 = vld [vmem:[#allocation10] sm:$0xff]
    %v132 = vld [vmem:[#allocation10 + $0x8] sm:$0x3]
    %v133 = vld [vmem:[#allocation11] sm:$0xff]
    %v134 = vld [vmem:[#allocation11 + $0x8] sm:$0xff]
    %v135 = vld [vmem:[#allocation11 + $0x10] sm:$0xff]
    %v136 = vld [vmem:[#allocation11 + $0x18] sm:$0xff]
    %vm137 = vcmask 261120
    %v139 = vsel %vm137, %v126, 0
    %141 = vmatprep.subr.mxu0 0.0
    %142 = vmatpush1.msra.mxu0 %v133
    %143 = vmatprep.subr.mxu0 0.0
    %144 = vmatpush1.msra.mxu0 %v134
    %145 = vmatprep.subr.mxu0 0.0
    %146 = vmatpush1.msra.mxu0 %v135
    %147 = vmatprep.subr.mxu0 0.0
    %148 = vmatpush1.msra.mxu0 %v136
    %149 = vmatprep.subr.mxu0 0.0
    %150 = vmatpush1.msra.mxu0 0.0
    %151 = vmatprep.subr.mxu0 0.0
    %152 = vmatpush1.msra.mxu0 0.0
    %153 = vmatprep.subr.mxu0 0.0
    %154 = vmatpush1.msra.mxu0 0.0
    %155 = vmatprep.subr.mxu0 0.0
    %156 = vmatpush1.msra.mxu0 0.0
    %157 = vmatprep.subr.mxu0 0.0
    %158 = vmatpush1.msra.mxu0 0.0
    %159 = vmatprep.subr.mxu0 0.0
    %160 = vmatpush1.msra.mxu0 0.0
    %161 = vmatprep.subr.mxu0 0.0
    %162 = vmatpush1.msra.mxu0 0.0
    %163 = vmatprep.subr.mxu0 0.0
    %164 = vmatpush1.msra.mxu0 0.0
    %165 = vmatprep.subr.mxu0 0.0
    %166 = vmatpush1.msra.mxu0 0.0
    %167 = vmatprep.subr.mxu0 0.0
    %168 = vmatpush1.msra.mxu0 0.0
    %169 = vmatprep.subr.mxu0 0.0
    %170 = vmatpush1.msra.mxu0 0.0
    %171 = vmatprep.subr.mxu0 0.0
    %172 = vmatpush1.msra.mxu0 0.0
    %173 = vmatprep.subr.mxu0 0.0
    %174 = vmatpush1.msra.mxu0 0.0
    %175 = vmatprep.subr.mxu0 0.0
    %176 = vmatpush1.msra.mxu0 0.0
    %177 = vmatprep.subr.mxu0 0.0
    %178 = vmatpush1.msra.mxu0 0.0
    %179 = vmatprep.subr.mxu0 0.0
    %180 = vmatpush1.msra.mxu0 0.0
    %181 = vmatprep.subr.mxu0 0.0
    %182 = vmatpush1.msra.mxu0 0.0
    %183 = vmatprep.subr.mxu0 0.0
    %184 = vmatpush1.msra.mxu0 0.0
    %185 = vmatprep.subr.mxu0 0.0
    %186 = vmatpush1.msra.mxu0 0.0
    %187 = vmatprep.subr.mxu0 0.0
    %188 = vmatpush1.msra.mxu0 0.0
    %189 = vmatprep.subr.mxu0 0.0
    %190 = vmatpush1.msra.mxu0 0.0
    %191 = vmatprep.subr.mxu0 0.0
    %192 = vmatpush1.msra.mxu0 0.0
    %193 = vmatprep.subr.mxu0 0.0
    %194 = vmatpush1.msra.mxu0 0.0
    %195 = vmatprep.subr.mxu0 0.0
    %196 = vmatpush1.msra.mxu0 0.0
    %197 = vmatprep.subr.mxu0 0.0
    %198 = vmatpush1.msra.mxu0 0.0
    %199 = vmatprep.subr.mxu0 0.0
    %200 = vmatpush1.msra.mxu0 0.0
    %201 = vmatprep.subr.mxu0 0.0
    %202 = vmatpush1.msra.mxu0 0.0
    %203 = vmatprep.subr.mxu0 0.0
    %204 = vmatpush1.msra.mxu0 0.0
    %205 = vmatprep.mubr.f32.mxu0 0.0
    %206 = vmatmul.mubr.f32.gmra.mrb[0].mxu0 %v139
    %v207 = vpop.f32.mrb[0].mxu0
    %v208 = vadd.f32 0.0, %v207
    %v209 = vpop.f32.mrb[0].mxu0
    %210 = vdwg.mxu0
    %vm211 = vcmask 80896
    %v213 = vsel %vm211, %v130, 0
    %vm215 = vcmask 1041408
    %v217 = vsel %vm215, %v132, 0
    %219 = vmatprep.subr.mxu0 0.0
    %220 = vmatpush1.msra.mxu0 %v131
    %221 = vmatprep.subr.mxu0 0.0
    %222 = vmatpush1.msra.mxu0 %v217
    %223 = vmatprep.subr.mxu0 0.0
    %224 = vmatpush1.msra.mxu0 0.0
    %225 = vmatprep.subr.mxu0 0.0
    %226 = vmatpush1.msra.mxu0 0.0
    %227 = vmatprep.subr.mxu0 0.0
    %228 = vmatpush1.msra.mxu0 0.0
    %229 = vmatprep.subr.mxu0 0.0
    %230 = vmatpush1.msra.mxu0 0.0
    %231 = vmatprep.subr.mxu0 0.0
    %232 = vmatpush1.msra.mxu0 0.0
    %233 = vmatprep.subr.mxu0 0.0
    %234 = vmatpush1.msra.mxu0 0.0
    %235 = vmatprep.subr.mxu0 0.0
    %236 = vmatpush1.msra.mxu0 0.0
    %237 = vmatprep.subr.mxu0 0.0
    %238 = vmatpush1.msra.mxu0 0.0
    %239 = vmatprep.subr.mxu0 0.0
    %240 = vmatpush1.msra.mxu0 0.0
    %241 = vmatprep.subr.mxu0 0.0
    %242 = vmatpush1.msra.mxu0 0.0
    %243 = vmatprep.subr.mxu0 0.0
    %244 = vmatpush1.msra.mxu0 0.0
    %245 = vmatprep.subr.mxu0 0.0
    %246 = vmatpush1.msra.mxu0 0.0
    %247 = vmatprep.subr.mxu0 0.0
    %248 = vmatpush1.msra.mxu0 0.0
    %249 = vmatprep.subr.mxu0 0.0
    %250 = vmatpush1.msra.mxu0 0.0
    %251 = vmatprep.subr.mxu0 0.0
    %252 = vmatpush1.msra.mxu0 0.0
    %253 = vmatprep.subr.mxu0 0.0
    %254 = vmatpush1.msra.mxu0 0.0
    %255 = vmatprep.subr.mxu0 0.0
    %256 = vmatpush1.msra.mxu0 0.0
    %257 = vmatprep.subr.mxu0 0.0
    %258 = vmatpush1.msra.mxu0 0.0
    %259 = vmatprep.subr.mxu0 0.0
    %260 = vmatpush1.msra.mxu0 0.0
    %261 = vmatprep.subr.mxu0 0.0
    %262 = vmatpush1.msra.mxu0 0.0
    %263 = vmatprep.subr.mxu0 0.0
    %264 = vmatpush1.msra.mxu0 0.0
    %265 = vmatprep.subr.mxu0 0.0
    %266 = vmatpush1.msra.mxu0 0.0
    %267 = vmatprep.subr.mxu0 0.0
    %268 = vmatpush1.msra.mxu0 0.0
    %269 = vmatprep.subr.mxu0 0.0
    %270 = vmatpush1.msra.mxu0 0.0
    %271 = vmatprep.subr.mxu0 0.0
    %272 = vmatpush1.msra.mxu0 0.0
    %273 = vmatprep.subr.mxu0 0.0
    %274 = vmatpush1.msra.mxu0 0.0
    %275 = vmatprep.subr.mxu0 0.0
    %276 = vmatpush1.msra.mxu0 0.0
    %277 = vmatprep.subr.mxu0 0.0
    %278 = vmatpush1.msra.mxu0 0.0
    %279 = vmatprep.subr.mxu0 0.0
    %280 = vmatpush1.msra.mxu0 0.0
    %281 = vmatprep.subr.mxu0 0.0
    %282 = vmatpush1.msra.mxu0 0.0
    %283 = vmatprep.mubr.f32.mxu0 0.0
    %284 = vmatmul.mubr.f32.gmra.mrb[0].mxu0 %v213
    %v285 = vpop.f32.mrb[0].mxu0
    %v286 = vadd.f32 %v208, %v285
    %v287 = vpop.f32.mrb[0].mxu0
    %288 = vdwg.mxu0
    %v289 = vld [vmem:[%s11] sm:$0x1]
    %v291 = vlaneseq
    %v292 = vshrl.u32 %v291, 7
    %v293 = vsub.s32 0, %v292
    %v294 = vrot.slane %v289, %v293
    %v296 = vadd.f32 %v286, %v294
    %v297 = vld [vmem:[#allocation7] sm:$0xff]
    %v298 = vld [vmem:[#allocation7 + $0x8] sm:$0xff]
    %v299 = vld [vmem:[#allocation7 + $0x10] sm:$0xff]
    %v300 = vld [vmem:[#allocation7 + $0x18] sm:$0xff]
    %v301 = vld [vmem:[#allocation8] sm:$0xff]
    %v302 = vld [vmem:[#allocation8 + $0x8] sm:$0xff]
    %v303 = vld [vmem:[#allocation8 + $0x10] sm:$0xff]
    %v304 = vld [vmem:[#allocation8 + $0x18] sm:$0xff]
    %v305 = vld [vmem:[%s6] sm:$0x1]
    %v307 = vlaneseq
    %v308 = vshrl.u32 %v307, 7
    %v309 = vsub.s32 0, %v308
    %v310 = vrot.slane %v305, %v309
    %312 = vmatprep.subr.mxu0 0.0
    %313 = vmatpush1.msra.mxu0 %v301
    %314 = vmatprep.subr.mxu0 0.0
    %315 = vmatpush1.msra.mxu0 %v302
    %316 = vmatprep.subr.mxu0 0.0
    %317 = vmatpush1.msra.mxu0 %v303
    %318 = vmatprep.subr.mxu0 0.0
    %319 = vmatpush1.msra.mxu0 %v304
    %320 = vmatprep.subr.mxu0 0.0
    %321 = vmatpush1.msra.mxu0 0.0
    %322 = vmatprep.subr.mxu0 0.0
    %323 = vmatpush1.msra.mxu0 0.0
    %324 = vmatprep.subr.mxu0 0.0
    %325 = vmatpush1.msra.mxu0 0.0
    %326 = vmatprep.subr.mxu0 0.0
    %327 = vmatpush1.msra.mxu0 0.0
    %328 = vmatprep.subr.mxu0 0.0
    %329 = vmatpush1.msra.mxu0 0.0
    %330 = vmatprep.subr.mxu0 0.0
    %331 = vmatpush1.msra.mxu0 0.0
    %332 = vmatprep.subr.mxu0 0.0
    %333 = vmatpush1.msra.mxu0 0.0
    %334 = vmatprep.subr.mxu0 0.0
    %335 = vmatpush1.msra.mxu0 0.0
    %336 = vmatprep.subr.mxu0 0.0
    %337 = vmatpush1.msra.mxu0 0.0
    %338 = vmatprep.subr.mxu0 0.0
    %339 = vmatpush1.msra.mxu0 0.0
    %340 = vmatprep.subr.mxu0 0.0
    %341 = vmatpush1.msra.mxu0 0.0
    %342 = vmatprep.subr.mxu0 0.0
    %343 = vmatpush1.msra.mxu0 0.0
    %344 = vmatprep.subr.mxu0 0.0
    %345 = vmatpush1.msra.mxu0 0.0
    %346 = vmatprep.subr.mxu0 0.0
    %347 = vmatpush1.msra.mxu0 0.0
    %348 = vmatprep.subr.mxu0 0.0
    %349 = vmatpush1.msra.mxu0 0.0
    %350 = vmatprep.subr.mxu0 0.0
    %351 = vmatpush1.msra.mxu0 0.0
    %352 = vmatprep.subr.mxu0 0.0
    %353 = vmatpush1.msra.mxu0 0.0
    %354 = vmatprep.subr.mxu0 0.0
    %355 = vmatpush1.msra.mxu0 0.0
    %356 = vmatprep.subr.mxu0 0.0
    %357 = vmatpush1.msra.mxu0 0.0
    %358 = vmatprep.subr.mxu0 0.0
    %359 = vmatpush1.msra.mxu0 0.0
    %360 = vmatprep.subr.mxu0 0.0
    %361 = vmatpush1.msra.mxu0 0.0
    %362 = vmatprep.subr.mxu0 0.0
    %363 = vmatpush1.msra.mxu0 0.0
    %364 = vmatprep.subr.mxu0 0.0
    %365 = vmatpush1.msra.mxu0 0.0
    %366 = vmatprep.subr.mxu0 0.0
    %367 = vmatpush1.msra.mxu0 0.0
    %368 = vmatprep.subr.mxu0 0.0
    %369 = vmatpush1.msra.mxu0 0.0
    %370 = vmatprep.subr.mxu0 0.0
    %371 = vmatpush1.msra.mxu0 0.0
    %372 = vmatprep.subr.mxu0 0.0
    %373 = vmatpush1.msra.mxu0 0.0
    %374 = vmatprep.subr.mxu0 0.0
    %375 = vmatpush1.msra.mxu0 0.0
    %376 = vmatprep.mubr.f32.mxu0 0.0
    %377 = vmatmul.mubr.f32.gmra.mrb[0].mxu0 %v139
    %v378 = vpop.f32.mrb[0].mxu0
    %v379 = vadd.f32 %v310, %v378
    %v380 = vpop.f32.mrb[0].mxu0
    %381 = vdwg.mxu0
    %v384 = vunpack.c.l.s4 1966171168
    %v385 = vunpack.c.0.s8 %v384
    %v386 = vlaneseq
    %v387 = vshrl.u32 %v386, 7
    %v388 = vsub.s32 %v385, %v387
    %v389 = vrot.slane %v379, %v388
    %v390 = vcombine.high %v389, %v389
    %v392 = vunpack.c.l.s4 1966171168
    %v393 = vunpack.c.0.s8 %v392
    %v394 = vlaneseq
    %v395 = vshrl.u32 %v394, 7
    %v396 = vsub.s32 %v393, %v395
    %v397 = vrot.slane %v389, %v396
    %v399 = vunpack.c.l.s4 1966171168
    %v400 = vunpack.c.0.s8 %v399
    %v401 = vlaneseq
    %v402 = vshrl.u32 %v401, 7
    %v403 = vsub.s32 %v400, %v402
    %v404 = vrot.slane %v390, %v403
    %v405 = vlaneseq
    %v406 = vshrl.u32 %v405, 7
    %v407 = vsub.s32 0, %v406
    %v408 = vrot.slane %v397, %v407
    %v409 = vlaneseq
    %v410 = vshrl.u32 %v409, 7
    %v411 = vsub.s32 0, %v410
    %v412 = vrot.slane %v404, %v411
    %v416 = vsel %vm137, %v128, 0
    %418 = vmatprep.subr.mxu0 0.0
    %419 = vmatpush1.msra.mxu0 %v297
    %420 = vmatprep.subr.mxu0 0.0
    %421 = vmatpush1.msra.mxu0 %v298
    %422 = vmatprep.subr.mxu0 0.0
    %423 = vmatpush1.msra.mxu0 %v299
    %424 = vmatprep.subr.mxu0 0.0
    %425 = vmatpush1.msra.mxu0 %v300
    %426 = vmatprep.subr.mxu0 0.0
    %427 = vmatpush1.msra.mxu0 0.0
    %428 = vmatprep.subr.mxu0 0.0
    %429 = vmatpush1.msra.mxu0 0.0
    %430 = vmatprep.subr.mxu0 0.0
    %431 = vmatpush1.msra.mxu0 0.0
    %432 = vmatprep.subr.mxu0 0.0
    %433 = vmatpush1.msra.mxu0 0.0
    %434 = vmatprep.subr.mxu0 0.0
    %435 = vmatpush1.msra.mxu0 0.0
    %436 = vmatprep.subr.mxu0 0.0
    %437 = vmatpush1.msra.mxu0 0.0
    %438 = vmatprep.subr.mxu0 0.0
    %439 = vmatpush1.msra.mxu0 0.0
    %440 = vmatprep.subr.mxu0 0.0
    %441 = vmatpush1.msra.mxu0 0.0
    %442 = vmatprep.subr.mxu0 0.0
    %443 = vmatpush1.msra.mxu0 0.0
    %444 = vmatprep.subr.mxu0 0.0
    %445 = vmatpush1.msra.mxu0 0.0
    %446 = vmatprep.subr.mxu0 0.0
    %447 = vmatpush1.msra.mxu0 0.0
    %448 = vmatprep.subr.mxu0 0.0
    %449 = vmatpush1.msra.mxu0 0.0
    %450 = vmatprep.subr.mxu0 0.0
    %451 = vmatpush1.msra.mxu0 0.0
    %452 = vmatprep.subr.mxu0 0.0
    %453 = vmatpush1.msra.mxu0 0.0
    %454 = vmatprep.subr.mxu0 0.0
    %455 = vmatpush1.msra.mxu0 0.0
    %456 = vmatprep.subr.mxu0 0.0
    %457 = vmatpush1.msra.mxu0 0.0
    %458 = vmatprep.subr.mxu0 0.0
    %459 = vmatpush1.msra.mxu0 0.0
    %460 = vmatprep.subr.mxu0 0.0
    %461 = vmatpush1.msra.mxu0 0.0
    %462 = vmatprep.subr.mxu0 0.0
    %463 = vmatpush1.msra.mxu0 0.0
    %464 = vmatprep.subr.mxu0 0.0
    %465 = vmatpush1.msra.mxu0 0.0
    %466 = vmatprep.subr.mxu0 0.0
    %467 = vmatpush1.msra.mxu0 0.0
    %468 = vmatprep.subr.mxu0 0.0
    %469 = vmatpush1.msra.mxu0 0.0
    %470 = vmatprep.subr.mxu0 0.0
    %471 = vmatpush1.msra.mxu0 0.0
    %472 = vmatprep.subr.mxu0 0.0
    %473 = vmatpush1.msra.mxu0 0.0
    %474 = vmatprep.subr.mxu0 0.0
    %475 = vmatpush1.msra.mxu0 0.0
    %476 = vmatprep.subr.mxu0 0.0
    %477 = vmatpush1.msra.mxu0 0.0
    %478 = vmatprep.subr.mxu0 0.0
    %479 = vmatpush1.msra.mxu0 0.0
    %480 = vmatprep.subr.mxu0 0.0
    %481 = vmatpush1.msra.mxu0 0.0
    %482 = vmatprep.mubr.f32.mxu0 0.0
    %483 = vmatmul.mubr.f32.gmra.mrb[0].mxu0 %v416
    %v484 = vpop.f32.mrb[0].mxu0
    %v485 = vadd.f32 %v408, %v484
    %v486 = vpop.f32.mrb[0].mxu0
    %487 = vdwg.mxu0
    %v489 = vsel %vm137, %v129, 0
    %491 = vmatprep.subr.mxu0 0.0
    %492 = vmatpush1.msra.mxu0 %v297
    %493 = vmatprep.subr.mxu0 0.0
    %494 = vmatpush1.msra.mxu0 %v298
    %495 = vmatprep.subr.mxu0 0.0
    %496 = vmatpush1.msra.mxu0 %v299
    %497 = vmatprep.subr.mxu0 0.0
    %498 = vmatpush1.msra.mxu0 %v300
    %499 = vmatprep.subr.mxu0 0.0
    %500 = vmatpush1.msra.mxu0 0.0
    %501 = vmatprep.subr.mxu0 0.0
    %502 = vmatpush1.msra.mxu0 0.0
    %503 = vmatprep.subr.mxu0 0.0
    %504 = vmatpush1.msra.mxu0 0.0
    %505 = vmatprep.subr.mxu0 0.0
    %506 = vmatpush1.msra.mxu0 0.0
    %507 = vmatprep.subr.mxu0 0.0
    %508 = vmatpush1.msra.mxu0 0.0
    %509 = vmatprep.subr.mxu0 0.0
    %510 = vmatpush1.msra.mxu0 0.0
    %511 = vmatprep.subr.mxu0 0.0
    %512 = vmatpush1.msra.mxu0 0.0
    %513 = vmatprep.subr.mxu0 0.0
    %514 = vmatpush1.msra.mxu0 0.0
    %515 = vmatprep.subr.mxu0 0.0
    %516 = vmatpush1.msra.mxu0 0.0
    %517 = vmatprep.subr.mxu0 0.0
    %518 = vmatpush1.msra.mxu0 0.0
    %519 = vmatprep.subr.mxu0 0.0
    %520 = vmatpush1.msra.mxu0 0.0
    %521 = vmatprep.subr.mxu0 0.0
    %522 = vmatpush1.msra.mxu0 0.0
    %523 = vmatprep.subr.mxu0 0.0
    %524 = vmatpush1.msra.mxu0 0.0
    %525 = vmatprep.subr.mxu0 0.0
    %526 = vmatpush1.msra.mxu0 0.0
    %527 = vmatprep.subr.mxu0 0.0
    %528 = vmatpush1.msra.mxu0 0.0
    %529 = vmatprep.subr.mxu0 0.0
    %530 = vmatpush1.msra.mxu0 0.0
    %531 = vmatprep.subr.mxu0 0.0
    %532 = vmatpush1.msra.mxu0 0.0
    %533 = vmatprep.subr.mxu0 0.0
    %534 = vmatpush1.msra.mxu0 0.0
    %535 = vmatprep.subr.mxu0 0.0
    %536 = vmatpush1.msra.mxu0 0.0
    %537 = vmatprep.subr.mxu0 0.0
    %538 = vmatpush1.msra.mxu0 0.0
    %539 = vmatprep.subr.mxu0 0.0
    %540 = vmatpush1.msra.mxu0 0.0
    %541 = vmatprep.subr.mxu0 0.0
    %542 = vmatpush1.msra.mxu0 0.0
    %543 = vmatprep.subr.mxu0 0.0
    %544 = vmatpush1.msra.mxu0 0.0
    %545 = vmatprep.subr.mxu0 0.0
    %546 = vmatpush1.msra.mxu0 0.0
    %547 = vmatprep.subr.mxu0 0.0
    %548 = vmatpush1.msra.mxu0 0.0
    %549 = vmatprep.subr.mxu0 0.0
    %550 = vmatpush1.msra.mxu0 0.0
    %551 = vmatprep.subr.mxu0 0.0
    %552 = vmatpush1.msra.mxu0 0.0
    %553 = vmatprep.subr.mxu0 0.0
    %554 = vmatpush1.msra.mxu0 0.0
    %555 = vmatprep.mubr.f32.mxu0 0.0
    %556 = vmatmul.mubr.f32.gmra.mrb[0].mxu0 %v489
    %v557 = vpop.f32.mrb[0].mxu0
    %v558 = vadd.f32 %v412, %v557
    %v559 = vpop.f32.mrb[0].mxu0
    %560 = vdwg.mxu0
    %v561 = vtanh.pop %v485
    %v562 = vtanh.pop %v558
    %v563 = vld [vmem:[%s7] sm:$0x1]
    %v565 = vlaneseq
    %v566 = vshrl.u32 %v565, 7
    %v567 = vsub.s32 0, %v566
    %v568 = vrot.slane %v563, %v567
    %v570 = vmul.f32 %v561, %v568
    %v571 = vmul.f32 %v562, %v568
    %v572 = vsel %vm137, %v570, 0.0
    %573 = vadd.xlane.f32.xlu0 %v572
    %v574 = vpop.xlane.xlu0 %573
    %v575 = vsel %vm137, %v571, 0.0
    %576 = vadd.xlane.f32.xlu0 %v575
    %v577 = vpop.xlane.xlu0 %576
    %v578 = vrot.slane %v574, 4
    %v579 = vmax.f32 %v574, %v578
    %v580 = vrot.slane %v579, 2
    %v581 = vmax.f32 %v579, %v580
    %v582 = vrot.slane %v581, 1
    %v583 = vmax.f32 %v581, %v582
    %v584 = vrot.slane %v577, 4
    %v585 = vmax.f32 %v577, %v584
    %v586 = vrot.slane %v585, 2
    %v587 = vmax.f32 %v585, %v586
    %v588 = vrot.slane %v587, 1
    %v589 = vmax.f32 %v587, %v588
    %v590 = vsub.f32 %v574, %v583
    %v591 = vsub.f32 %v577, %v589
    %v592 = vmul.f32 %v590, 1.442695
    %v593 = vpow.pop %v592
    %v594 = vmul.f32 %v591, 1.442695
    %v595 = vpow.pop %v594
    %v596 = vrot.slane %v593, 4
    %v597 = vadd.f32 %v593, %v596
    %v598 = vrot.slane %v597, 2
    %v599 = vadd.f32 %v597, %v598
    %v600 = vrot.slane %v599, 1
    %v601 = vadd.f32 %v599, %v600
    %v602 = vrot.slane %v595, 4
    %v603 = vadd.f32 %v595, %v602
    %v604 = vrot.slane %v603, 2
    %v605 = vadd.f32 %v603, %v604
    %v606 = vrot.slane %v605, 1
    %v607 = vadd.f32 %v605, %v606
    %v608 = vrcp.pop %v601
    %v609 = vmul.f32 %v593, %v608
    %v610 = vrcp.pop %v607
    %v611 = vmul.f32 %v595, %v610
    %v612 = vmul.f32 %v609, %v128
    %v613 = vmul.f32 %v611, %v129
    %v614 = vsel %vm137, %v612, 0.0
    %v615 = vrot.slane %v614, 4
    %v616 = vadd.f32 %v614, %v615
    %v617 = vrot.slane %v616, 2
    %v618 = vadd.f32 %v616, %v617
    %v619 = vrot.slane %v618, 1
    %v620 = vadd.f32 %v618, %v619
    %v621 = vsel %vm137, %v613, 0.0
    %v622 = vrot.slane %v621, 4
    %v623 = vadd.f32 %v621, %v622
    %v624 = vrot.slane %v623, 2
    %v625 = vadd.f32 %v623, %v624
    %v626 = vrot.slane %v625, 1
    %v627 = vadd.f32 %v625, %v626
    %v628 = vld [vmem:[%s8] sm:$0xff]
    %v629 = vld [vmem:[%s8 + $0x8] sm:$0xff]
    %v630 = vld [vmem:[%s8 + $0x10] sm:$0xff]
    %v631 = vld [vmem:[%s8 + $0x18] sm:$0xff]
    %vm634 = vcmask 1041409
    %v635 = vsel %vm634, %v627, %v620
    %v636 = vsel %vm137, %v635, 0
    %638 = vmatprep.subr.mxu0 0.0
    %639 = vmatpush1.msra.mxu0 %v628
    %640 = vmatprep.subr.mxu0 0.0
    %641 = vmatpush1.msra.mxu0 %v629
    %642 = vmatprep.subr.mxu0 0.0
    %643 = vmatpush1.msra.mxu0 %v630
    %644 = vmatprep.subr.mxu0 0.0
    %645 = vmatpush1.msra.mxu0 %v631
    %646 = vmatprep.subr.mxu0 0.0
    %647 = vmatpush1.msra.mxu0 0.0
    %648 = vmatprep.subr.mxu0 0.0
    %649 = vmatpush1.msra.mxu0 0.0
    %650 = vmatprep.subr.mxu0 0.0
    %651 = vmatpush1.msra.mxu0 0.0
    %652 = vmatprep.subr.mxu0 0.0
    %653 = vmatpush1.msra.mxu0 0.0
    %654 = vmatprep.subr.mxu0 0.0
    %655 = vmatpush1.msra.mxu0 0.0
    %656 = vmatprep.subr.mxu0 0.0
    %657 = vmatpush1.msra.mxu0 0.0
    %658 = vmatprep.subr.mxu0 0.0
    %659 = vmatpush1.msra.mxu0 0.0
    %660 = vmatprep.subr.mxu0 0.0
    %661 = vmatpush1.msra.mxu0 0.0
    %662 = vmatprep.subr.mxu0 0.0
    %663 = vmatpush1.msra.mxu0 0.0
    %664 = vmatprep.subr.mxu0 0.0
    %665 = vmatpush1.msra.mxu0 0.0
    %666 = vmatprep.subr.mxu0 0.0
    %667 = vmatpush1.msra.mxu0 0.0
    %668 = vmatprep.subr.mxu0 0.0
    %669 = vmatpush1.msra.mxu0 0.0
    %670 = vmatprep.subr.mxu0 0.0
    %671 = vmatpush1.msra.mxu0 0.0
    %672 = vmatprep.subr.mxu0 0.0
    %673 = vmatpush1.msra.mxu0 0.0
    %674 = vmatprep.subr.mxu0 0.0
    %675 = vmatpush1.msra.mxu0 0.0
    %676 = vmatprep.subr.mxu0 0.0
    %677 = vmatpush1.msra.mxu0 0.0
    %678 = vmatprep.subr.mxu0 0.0
    %679 = vmatpush1.msra.mxu0 0.0
    %680 = vmatprep.subr.mxu0 0.0
    %681 = vmatpush1.msra.mxu0 0.0
    %682 = vmatprep.subr.mxu0 0.0
    %683 = vmatpush1.msra.mxu0 0.0
    %684 = vmatprep.subr.mxu0 0.0
    %685 = vmatpush1.msra.mxu0 0.0
    %686 = vmatprep.subr.mxu0 0.0
    %687 = vmatpush1.msra.mxu0 0.0
    %688 = vmatprep.subr.mxu0 0.0
    %689 = vmatpush1.msra.mxu0 0.0
    %690 = vmatprep.subr.mxu0 0.0
    %691 = vmatpush1.msra.mxu0 0.0
    %692 = vmatprep.subr.mxu0 0.0
    %693 = vmatpush1.msra.mxu0 0.0
    %694 = vmatprep.subr.mxu0 0.0
    %695 = vmatpush1.msra.mxu0 0.0
    %696 = vmatprep.subr.mxu0 0.0
    %697 = vmatpush1.msra.mxu0 0.0
    %698 = vmatprep.subr.mxu0 0.0
    %699 = vmatpush1.msra.mxu0 0.0
    %700 = vmatprep.subr.mxu0 0.0
    %701 = vmatpush1.msra.mxu0 0.0
    %702 = vmatprep.mubr.f32.mxu0 0.0
    %703 = vmatmul.mubr.f32.gmra.mrb[0].mxu0 %v636
    %v704 = vpop.f32.mrb[0].mxu0
    %v705 = vadd.f32 0.0, %v704
    %v706 = vpop.f32.mrb[0].mxu0
    %707 = vdwg.mxu0
    %v708 = vadd.f32 %v296, %v705
    %v709 = vxor.u32 %v708, 2147483648
    %v710 = vmul.f32 %v709, 1.442695
    %v711 = vpow.pop %v710
    %v712 = vadd.f32 %v711, 1.0
    %v713 = vrcp.pop %v712
    %v714 = vmul.f32 1.0, %v713
    %v715 = vtanh.pop %v708
    %717 = vrot.lane.b32.xlu0 %v127, 32
    %v718 = vpop.permute.xlu0 %717
    %v720 = vmul.f32 %v714, %v718
    %722 = vrot.lane.b32.xlu0 %v715, 64
    %v723 = vpop.permute.xlu0 %722
    %v725 = vmul.f32 %v714, %v723
    %727 = vrot.lane.b32.xlu0 %v725, 32
    %v728 = vpop.permute.xlu0 %727
    %v730 = vadd.f32 %v720, %v728
    %v731 = vtanh.pop %v730
    %733 = vrot.lane.b32.xlu0 %v731, 64
    %v734 = vpop.permute.xlu0 %733
    %v736 = vmul.f32 %v714, %v734
    %738 = vrot.lane.b32.xlu0 %v736, 32
    %v739 = vpop.permute.xlu0 %738
    %vm741 = vcmask 254976
    %742 = vst.msk [vmem:[#allocation13] sm:$0x3] %vm741, %v739
    %744 = vrot.lane.b32.xlu0 %v730, 96
    %v745 = vpop.permute.xlu0 %744
    %747 = vst.msk [vmem:[#allocation14] sm:$0x3] %vm741, %v745
    %vm748 = vcmask 7168
    %749 = vst.msk [vmem:[%s14] sm:$0xff] %vm748, %v609
    %750 = vst.msk [vmem:[%s14 + $0x8] sm:$0xff] %vm748, %v611
    // Predicated region
    $region74: #{attention_cell.1} parent=1 // pred_check
      _
    $region75: #{attention_cell.1} parent=1 // pred_check_branch
      %752 = sbr.rel (0) target = $region77
    $region76: #{attention_cell.1} parent=1 // pred_region
      %s754 = ssub.s32 32, 32
      %755 = vsyncadd [#allocation4], %s754
      %s757 = sshll.u32 [#allocation13], 4
      %s758 = int_to_ptr.vmem [resolvable:$true] %s757
      %760 = dma.vmem_to_hbm [thread:$0]  %s758, 32, %s12, [#allocation4]
    $region77: #{attention_cell.1} parent=1 // pred_fallthru
      _
    // Predicated region
    $region78: #{attention_cell.1} parent=1 // pred_check
      _
    $region79: #{attention_cell.1} parent=1 // pred_check_branch
      %762 = sbr.rel (0) target = $region81
    $region80: #{attention_cell.1} parent=1 // pred_region
      %s764 = ssub.s32 32, 32
      %765 = vsyncadd [#allocation15], %s764
      %s767 = sshll.u32 [#allocation14], 4
      %s768 = int_to_ptr.vmem [resolvable:$true] %s767
      %770 = dma.vmem_to_hbm [thread:$0]  %s768, 32, %s13, [#allocation15]
    $region81: #{attention_cell.1} parent=1 // pred_fallthru
      _
    // Predicated region
    $region82: #{attention_cell.1} parent=1 // pred_check
      _
    $region83: #{attention_cell.1} parent=1 // pred_check_branch
      %772 = sbr.rel (0) target = $region85
    $region84: #{attention_cell.1} parent=1 // pred_region
      _
    $region85: #{attention_cell.1} parent=1 // pred_fallthru
      _
    // Predicated region
    $region86: #{attention_cell.1} parent=1 // pred_check
      _
    $region87: #{attention_cell.1} parent=1 // pred_check_branch
      %774 = sbr.rel (0) target = $region89
    $region88: #{attention_cell.1} parent=1 // pred_region
      %775 = dma.done [#allocation4], 32
    $region89: #{attention_cell.1} parent=1 // pred_fallthru
      _
    // Predicated region
    $region90: #{attention_cell.1} parent=1 // pred_check
      _
    $region91: #{attention_cell.1} parent=1 // pred_check_branch
      %777 = sbr.rel (0) target = $region93
    $region92: #{attention_cell.1} parent=1 // pred_region
      %778 = dma.done [#allocation15], 32
    $region93: #{attention_cell.1} parent=1 // pred_fallthru
      _
    // Predicated region
    $region94: #{attention_cell.1} parent=1 // pred_check
      _
    $region95: #{attention_cell.1} parent=1 // pred_check_branch
      %780 = sbr.rel (0) target = $region97
    $region96: #{attention_cell.1} parent=1 // pred_region
      _
    $region97: #{attention_cell.1} parent=1 // pred_fallthru
      _
    %781 = vsyncpa [#allocation3], 1
    %782 = vsyncpa [#allocation6], 1
    %783 = vsyncpa [#allocation9], 1
    %784 = vsyncpa [#allocation12], 1
    %785 = vsyncpa [#allocation4], 1
    %786 = vsyncpa [#allocation15], 1

</llo_original>
